<compile_context>
chip_gen: v7x
topology: tpu7x:2x2x1
jax: 0.10.0
libtpu: 0.0.40
codegen_flags: <defaults>
</compile_context>

<pallas_src>
import jax
import jax.numpy as jnp
from jax.experimental import pallas as pl
from jax.experimental.pallas import tpu as pltpu


def make_positional_encoding(seq_len, dim_model):
    """[1, seq_len, dim_model] float32 table matching the PyTorch double loop."""
    pos = jnp.arange(seq_len, dtype=jnp.float32)[:, None]          # (S, 1)
    idx = jnp.arange(dim_model, dtype=jnp.int32)[None, :]          # (1, D)
    i_f = idx.astype(jnp.float32)
    even_angle = pos / jnp.power(10000.0, i_f / float(dim_model))
    odd_angle = pos / jnp.power(10000.0, (i_f - 1.0) / float(dim_model))
    pe = jnp.where(idx % 2 == 0, jnp.sin(even_angle), jnp.cos(odd_angle))
    return pe[None].astype(jnp.float32)                            # (1, S, D)


def _pick_seq_tile(batch, seq_len, dim_model, max_block_bytes=4 * 1024 * 1024):
    """Largest seq tile such that the batch-blocked (B, ts, D) f32 block stays
    under max_block_bytes, ts divides S, ts is (8,...)-friendly, and — when
    possible — S//ts >= 2 so the v7x megacore gets >=2 parallel tiles."""
    bytes_per_seq_row = batch * dim_model * 4
    limit = max(8, max_block_bytes // bytes_per_seq_row)
    candidates = [t for t in (2048, 1024, 512, 256, 128, 64, 32, 16, 8)
                  if t <= limit and seq_len % t == 0]
    for t in candidates:                       # prefer >=2 seq tiles (megacore)
        if seq_len // t >= 2:
            return t
    if candidates:
        return candidates[0]
    # Full-S block only if it actually fits the budget (never unbounded).
    if seq_len * bytes_per_seq_row <= max_block_bytes:
        return seq_len
    # Last resort: largest multiple-of-8 divisor of S under the limit.
    best = 8
    for cand in range(8, seq_len + 1, 8):
        if seq_len % cand == 0 and cand <= limit:
            best = cand
    return best


def _pe_add_kernel(x_ref, pe_ref, o_ref):
    # x_ref/o_ref: (B, ts, D); pe_ref: (1, ts, D) -> broadcast add over batch.
    o_ref[...] = (x_ref[...] + pe_ref[...]).astype(o_ref.dtype)


def _pe_add_dropout_kernel(x_ref, pe_ref, m_ref, o_ref):
    # m_ref holds 0.0 (dropped) or 1/keep_prob (kept), matching nn.Dropout.
    o_ref[...] = ((x_ref[...] + pe_ref[...]) * m_ref[...]).astype(o_ref.dtype)


def positional_encoding(x, pe, *, dropout_rate=0.0, training=False, seed=0):
    """x: [B, S, D] float32; pe: [1, seq_len >= S, D] float32.

    Returns Dropout(x + pe[:, :S, :]).  Eval mode (training=False) is the
    deterministic add, matching nn.Dropout in eval().
    """
    B, S, D = x.shape
    assert pe.shape[0] == 1 and pe.shape[2] == D and pe.shape[1] >= S
    pe = pe[:, :S, :]

    apply_dropout = bool(training) and float(dropout_rate) > 0.0
    if apply_dropout:
        assert 0.0 < float(dropout_rate) < 1.0

    ts = _pick_seq_tile(B, S, D)
    grid = (S // ts,)

    x_spec = pl.BlockSpec((B, ts, D), lambda j: (0, j, 0))
    pe_spec = pl.BlockSpec((1, ts, D), lambda j: (0, j, 0))

    in_specs = [x_spec, pe_spec]
    args = [x, pe]
    if apply_dropout:
        keep_prob = 1.0 - float(dropout_rate)
        # Host-side scaled keep mask (0 or 1/keep_prob), streamed as f32.
        key = jax.random.PRNGKey(seed)
        mask = (jax.random.bernoulli(key, keep_prob, (B, S, D)).astype(x.dtype)
                * jnp.asarray(1.0 / keep_prob, dtype=x.dtype))
        in_specs.append(x_spec)
        args.append(mask)
        kernel = _pe_add_dropout_kernel
    else:
        kernel = _pe_add_kernel

    # Double-buffered VMEM footprint: (x, out, [mask]) at B*ts*D + pe at ts*D.
    n_big = 3 if apply_dropout else 2
    elem_bytes = jnp.dtype(x.dtype).itemsize
    footprint = 2 * (n_big * B + 1) * ts * D * elem_bytes
    vmem_limit = int(min(64 * 2 ** 20, max(16 * 2 ** 20, footprint + (2 << 20))))

    out = pl.pallas_call(
        kernel,
        out_shape=jax.ShapeDtypeStruct((B, S, D), x.dtype),
        grid_spec=pltpu.PrefetchScalarGridSpec(
            num_scalar_prefetch=0,
            grid=grid,
            in_specs=in_specs,
            out_specs=x_spec,
        ),
        compiler_params=pltpu.CompilerParams(
            dimension_semantics=("parallel",),
            vmem_limit_bytes=vmem_limit),
    )(*args)
    return out


if __name__ == "__main__":
    # Small shapes consistent with the module: batch=2, seq_len=8, dim_model=128.
    B, S, D = 2, 8, 128
    dropout_p = 0.1

    key = jax.random.PRNGKey(0)
    x = jax.random.normal(key, (B, S, D), dtype=jnp.float32)
    pe = make_positional_encoding(S, D)

    # Eval-mode forward (dropout is identity) -- deterministic check.
    out = positional_encoding(x, pe, dropout_rate=dropout_p, training=False)
    out = jax.block_until_ready(out)
    ref = x + pe[:, :S, :]
    assert out.shape == (B, S, D)
    assert jnp.allclose(out, ref, atol=1e-5, rtol=1e-5)

    # Training-mode check: surviving elements are scaled by 1/(1-p),
    # dropped fraction is statistically near p.  (out == 0 as "dropped" is a
    # test artifact; an element where x+pe == 0 exactly would miscount.)
    p_train = 0.5
    out_tr = positional_encoding(x, pe, dropout_rate=p_train, training=True,
                                 seed=123)
    out_tr = jax.block_until_ready(out_tr)
    assert out_tr.shape == (B, S, D)
    dropped = (out_tr == 0.0)
    kept_kernel = jnp.where(dropped, 0.0, out_tr)
    kept_ref = jnp.where(dropped, 0.0, ref / (1.0 - p_train))
    assert jnp.allclose(kept_kernel, kept_ref, atol=1e-5, rtol=1e-5)
    frac_dropped = float(dropped.mean())
    assert 0.25 < frac_dropped < 0.75  # 2048 samples at p=0.5: very loose bound

    print("KERNEL_OK")
</pallas_src>

<mosaic_0001>
module attributes {stable_mosaic.version = 11 : i64} {
  func.func @_pe_add_kernel(%arg0: i32, %arg1: memref<2x8x128xf32, #tpu.memory_space<vmem>>, %arg2: memref<1x8x128xf32, #tpu.memory_space<vmem>>, %arg3: memref<2x8x128xf32, #tpu.memory_space<vmem>>) attributes {dimension_semantics = [#tpu.dimension_semantics<parallel>], iteration_bounds = array<i64: 1>, scalar_prefetch = 0 : i64, scratch_operands = 0 : i64, tpu.core_type = #tpu.core_type<tc>, window_params = [{transform_indices = @transform_0, window_bounds = array<i64: 2, 8, 128>}, {transform_indices = @transform_1, window_bounds = array<i64: 1, 8, 128>}, {transform_indices = @transform_2, window_bounds = array<i64: 2, 8, 128>}]} {
    %c0 = arith.constant 0 : index
    %c0_0 = arith.constant 0 : index
    %c0_1 = arith.constant 0 : index
    %0 = vector.load %arg1[%c0, %c0_0, %c0_1] : memref<2x8x128xf32, #tpu.memory_space<vmem>>, vector<2x8x128xf32>
    %c0_2 = arith.constant 0 : index
    %c0_3 = arith.constant 0 : index
    %c0_4 = arith.constant 0 : index
    %1 = vector.load %arg2[%c0_2, %c0_3, %c0_4] : memref<1x8x128xf32, #tpu.memory_space<vmem>>, vector<1x8x128xf32>
    %2 = vector.broadcast %1 : vector<1x8x128xf32> to vector<2x8x128xf32>
    %3 = arith.addf %0, %2 : vector<2x8x128xf32>
    %c0_5 = arith.constant 0 : index
    %c0_6 = arith.constant 0 : index
    %c0_7 = arith.constant 0 : index
    %4 = vector.load %arg3[%c0_5, %c0_6, %c0_7] : memref<2x8x128xf32, #tpu.memory_space<vmem>>, vector<2x8x128xf32>
    tpu.vector_store %arg3[%c0_5, %c0_6, %c0_7], %3 {strides = array<i32>} : memref<2x8x128xf32, #tpu.memory_space<vmem>>, vector<2x8x128xf32>,
    return
  }
  func.func @transform_0(%arg0: i32) -> (i32, i32, i32) {
    %c0_i32 = arith.constant 0 : i32
    %c0_i32_0 = arith.constant 0 : i32
    %c0_i32_1 = arith.constant 0 : i32
    return %c0_i32, %arg0, %c0_i32_0 : i32, i32, i32
  }
  func.func @transform_1(%arg0: i32) -> (i32, i32, i32) {
    %c0_i32 = arith.constant 0 : i32
    %c0_i32_0 = arith.constant 0 : i32
    %c0_i32_1 = arith.constant 0 : i32
    return %c0_i32, %arg0, %c0_i32_0 : i32, i32, i32
  }
  func.func @transform_2(%arg0: i32) -> (i32, i32, i32) {
    %c0_i32 = arith.constant 0 : i32
    %c0_i32_0 = arith.constant 0 : i32
    %c0_i32_1 = arith.constant 0 : i32
    return %c0_i32, %arg0, %c0_i32_0 : i32, i32, i32
  }
}

</mosaic_0001>

<llo_original>
// kernel: tpu_custom_call.1
$region0: #{tpu_custom_call.1}
  #allocation0 [shape = 'u32[]', space=smem, size = 0x4, offset = 0x4, fixed_abs, tag = 'smem constant byte address 0x4 - core index']
  #allocation1 [shape = 'u32[144,128]{1,0:T(1,128)}', space=vmem, size = 0x12000, scoped, tag = 'internal scratch']
  %s0 = inlined_call_operand.hbm [shape: f32[2,8,128], index: 0, kind: input, shape index: {}]
  %s1 = inlined_call_operand.hbm [shape: f32[1,8,128], index: 1, kind: input, shape index: {}]
  %s2 = inlined_call_operand.hbm [shape: f32[2,8,128], index: 2, kind: output, shape index: {}]
  %s3 = sld [smem:[#allocation0]]
  $region26: #{tpu_custom_call.1} parent=0
    _
  %s5 = ssub.s32 1, %s3
  %s6 = scalar_select 0, %s5, %s3
  $region1: #{tpu_custom_call.1} parent=0
    #allocation2 [shape = 'u8[8192]{0}', space=vmem, size = 0x2000, scoped, tag = 'input window, operand 0, single buffered']
    #allocation3 [shape = 's32[1]{0}', space=sflag, size = 0x4, scoped, tag = 'scoped memory for tpu_custom_call.1']
    #allocation4 [shape = 's32[1]{0}', space=sflag, size = 0x4, scoped, tag = 'scoped memory for tpu_custom_call.1']
    #allocation5 [shape = 'u8[4096]{0}', space=vmem, size = 0x1000, scoped, tag = 'input window, operand 1, single buffered']
    #allocation6 [shape = 's32[1]{0}', space=sflag, size = 0x4, scoped, tag = 'scoped memory for tpu_custom_call.1']
    #allocation7 [shape = 'u8[8192]{0}', space=vmem, size = 0x2000, scoped, tag = 'output window, operand 0, single buffered']
    %7 = vsyncpa [#allocation3], 0
    %8 = vsyncpa [#allocation6], 0
    %9 = vsyncpa [#allocation4], 0
    // Predicated region
    $region2: #{tpu_custom_call.1} parent=1 // pred_check
      _
    $region3: #{tpu_custom_call.1} parent=1 // pred_check_branch
      %11 = sbr.rel (0) target = $region5
    $region4: #{tpu_custom_call.1} parent=1 // pred_region
      %s13 = ssub.s32 256, 256
      %14 = vsyncadd [#allocation3], %s13
      %s15 = sshll.u32 [#allocation2], 4
      %s16 = int_to_ptr.vmem [resolvable:$true] %s15
      %21 = dma.hbm_to_vmem [thread:$0]  %s0, 256, %s16, [#allocation3], 128, 128, 8
    $region5: #{tpu_custom_call.1} parent=1 // pred_fallthru
      _
    // Predicated region
    $region6: #{tpu_custom_call.1} parent=1 // pred_check
      _
    $region7: #{tpu_custom_call.1} parent=1 // pred_check_branch
      %23 = sbr.rel (0) target = $region9
    $region8: #{tpu_custom_call.1} parent=1 // pred_region
      %s25 = ssub.s32 128, 128
      %26 = vsyncadd [#allocation6], %s25
      %s28 = sshll.u32 [#allocation5], 4
      %s29 = int_to_ptr.vmem [resolvable:$true] %s28
      %31 = dma.hbm_to_vmem [thread:$0]  %s1, 128, %s29, [#allocation6]
    $region9: #{tpu_custom_call.1} parent=1 // pred_fallthru
      _
    // Predicated region
    $region10: #{tpu_custom_call.1} parent=1 // pred_check
      _
    $region11: #{tpu_custom_call.1} parent=1 // pred_check_branch
      %33 = sbr.rel (0) target = $region13
    $region12: #{tpu_custom_call.1} parent=1 // pred_region
      %34 = dma.done [#allocation3], 256
    $region13: #{tpu_custom_call.1} parent=1 // pred_fallthru
      _
    // Predicated region
    $region14: #{tpu_custom_call.1} parent=1 // pred_check
      _
    $region15: #{tpu_custom_call.1} parent=1 // pred_check_branch
      %36 = sbr.rel (0) target = $region17
    $region16: #{tpu_custom_call.1} parent=1 // pred_region
      %37 = dma.done [#allocation6], 128
    $region17: #{tpu_custom_call.1} parent=1 // pred_fallthru
      _
    %v38 = vld [vmem:[#allocation2] sm:$0xff]
    %v39 = vld [vmem:[#allocation2 + $0x8] sm:$0xff]
    %v40 = vld [vmem:[#allocation5] sm:$0xff]
    %v41 = vadd.f32 %v38, %v40
    %v42 = vadd.f32 %v39, %v40
    %43 = vst [vmem:[#allocation7] sm:$0xff] %v41
    %44 = vst [vmem:[#allocation7 + $0x8] sm:$0xff] %v42
    // Predicated region
    $region18: #{tpu_custom_call.1} parent=1 // pred_check
      _
    $region19: #{tpu_custom_call.1} parent=1 // pred_check_branch
      %46 = sbr.rel (0) target = $region21
    $region20: #{tpu_custom_call.1} parent=1 // pred_region
      %s48 = ssub.s32 256, 256
      %49 = vsyncadd [#allocation4], %s48
      %s50 = sshll.u32 [#allocation7], 4
      %s51 = int_to_ptr.vmem [resolvable:$true] %s50
      %56 = dma.vmem_to_hbm [thread:$0]  %s51, 256, %s2, [#allocation4], 128, 128, 8
    $region21: #{tpu_custom_call.1} parent=1 // pred_fallthru
      _
    // Predicated region
    $region22: #{tpu_custom_call.1} parent=1 // pred_check
      _
    $region23: #{tpu_custom_call.1} parent=1 // pred_check_branch
      %58 = sbr.rel (0) target = $region25
    $region24: #{tpu_custom_call.1} parent=1 // pred_region
      %59 = dma.done [#allocation4], 256
    $region25: #{tpu_custom_call.1} parent=1 // pred_fallthru
      _
    %60 = vsyncpa [#allocation3], 1
    %61 = vsyncpa [#allocation6], 1
    %62 = vsyncpa [#allocation4], 1

</llo_original>
